<compile_context>
chip_gen: v5e
topology: v5e:2x2
jax: 0.10.0
libtpu: 0.0.40
codegen_flags: <defaults>
</compile_context>

<pallas_src>
import jax
import jax.numpy as jnp
from jax.experimental import pallas as pl
from jax.experimental.pallas import tpu as pltpu


_HW_CHUNK = 8  # sublane-aligned chunk of the pooled (H*W) axis


def _round_up(x, m):
    return ((x + m - 1) // m) * m


def _make_head_kernel(hw):
    """Build the fused head kernel for a feature map with hw = H*W rows."""
    n_full = hw // _HW_CHUNK
    rem = hw - n_full * _HW_CHUNK

    def kernel(x_ref, w_ref, b_ref, o_ref):
        # x_ref : [TB, HW, C]   batch tile, channels lane-dense
        # w_ref : [C, NCP]      fc weight^T, pre-scaled by 1/(H*W), classes padded
        # b_ref : [1, NCP]      fc bias (padded)
        # o_ref : [TB, NCP]
        tb = x_ref.shape[0]
        c = x_ref.shape[2]

        def chunk_sum(xs):
            # F.relu in the input dtype (bf16 VALU on v6e/v7x); accumulate f32.
            xs = jnp.maximum(xs, 0)
            return jnp.sum(xs.astype(jnp.float32), axis=1)

        acc = jnp.zeros((tb, c), jnp.float32)

        if n_full > 0:
            def body(j, a):
                start = pl.multiple_of(j * _HW_CHUNK, _HW_CHUNK)
                return a + chunk_sum(x_ref[:, pl.ds(start, _HW_CHUNK), :])
            acc = jax.lax.fori_loop(0, n_full, body, acc, unroll=True)

        if rem > 0:  # ragged HW tail (static slice)
            acc = acc + chunk_sum(x_ref[:, n_full * _HW_CHUNK:, :])

        # Dropout(0.3) is identity in eval mode (inference semantics).
        out = jnp.dot(acc, w_ref[...], preferred_element_type=jnp.float32)
        o_ref[...] = out + b_ref[...]

    return kernel


def _choose_tb(B, HW, C, in_bytes, x_tile_budget=28 << 20):
    """Batch-tile size.

    * TB == B (single step) for tiny batches.
    * Otherwise TB is a multiple of 8 (unmasked output-sublane stores), capped
      so that (a) the grid has >= 2 steps (v7x has 2 TensorCores and
      dimension_semantics=("parallel",) only helps with >= 2 iterations) and
      (b) the double-buffered [TB, HW, C] input tile stays within the budget
      (v7x VMEM is 64 MiB; v5e/v6e have 128 MiB and are DMA-bound anyway).
    """
    if B <= 8:
        return B
    tb = min(64, _round_up(-(-B // 2), 8))              # >= 2 grid steps
    cap = x_tile_budget // max(2 * HW * C * in_bytes, 1)
    cap = max(8, (cap // 8) * 8)
    return max(8, min(tb, cap))


def efficientnet_b2_head(features, fc_weight, fc_bias, *, channels_last=True):
    """Fused relu -> global-avg-pool -> (dropout eval) -> fc head.

    features : backbone feature map, channels-last [B, H, W, C] or [B, HW, C]
               (f32 or bf16).  Set channels_last=False for the literal PyTorch
               NCHW [B, C, H, W] layout (costs one extra HBM transpose pass;
               prefer NHWC on TPU).
    fc_weight: [num_classes, C] (PyTorch nn.Linear layout).
    fc_bias  : [num_classes].
    Returns  : logits [B, num_classes], float32.
    """
    if not channels_last:
        features = jnp.transpose(features, (0, 2, 3, 1))  # NCHW -> NHWC fallback

    if features.ndim == 4:
        B, H, W, C = features.shape
        HW = H * W
        x = features.reshape(B, HW, C)     # contiguous middle-dim collapse: free
    else:
        B, HW, C = features.shape
        x = features

    NC = fc_weight.shape[0]
    NCP = _round_up(NC, 128)               # lane-dense output width

    in_bytes = jnp.dtype(x.dtype).itemsize
    TB = _choose_tb(B, HW, C, in_bytes)
    grid = (pl.cdiv(B, TB),)               # ragged last block; no batch pad

    # Fold the 1/(H*W) pooling scale into the fc weight; pad classes to NCP.
    w = fc_weight.T.astype(jnp.float32) / float(HW)            # [C, NC]
    w = jnp.pad(w, ((0, 0), (0, NCP - NC)))                    # [C, NCP]
    b = jnp.pad(fc_bias.astype(jnp.float32), (0, NCP - NC)).reshape(1, NCP)

    # VMEM budget (v7x = 64 MiB physical; request <= 40 MiB with headroom).
    chunk = min(_HW_CHUNK, HW)
    vmem_needed = (2 * TB * HW * C * in_bytes              # x tiles (double-buffered)
                   + TB * C * 4                            # f32 pooled accumulator
                   + 2 * TB * chunk * C * (in_bytes + 4)   # per-chunk relu/f32 temps
                   + 2 * C * NCP * 4                       # fc weight (+ idle 2nd buf)
                   + 2 * NCP * 4                           # fc bias
                   + 2 * TB * NCP * 4)                     # output tiles
    vmem_limit = int(min(max(vmem_needed + (4 << 20), 16 << 20), 40 << 20))

    out = pl.pallas_call(
        _make_head_kernel(HW),
        out_shape=jax.ShapeDtypeStruct((B, NCP), jnp.float32),
        grid=grid,
        in_specs=[
            pl.BlockSpec((TB, HW, C), lambda i: (i, 0, 0)),   # batched x tile
            pl.BlockSpec((C, NCP), lambda i: (0, 0)),         # fc weight (grid-invariant)
            pl.BlockSpec((1, NCP), lambda i: (0, 0)),         # fc bias (grid-invariant)
        ],
        out_specs=pl.BlockSpec((TB, NCP), lambda i: (i, 0)),
        compiler_params=pltpu.CompilerParams(
            dimension_semantics=("parallel",),
            vmem_limit_bytes=vmem_limit),
    )(x, w, b)

    return out[:, :NC]


def _reference(features_nhwc, fc_weight, fc_bias):
    x = jnp.maximum(features_nhwc.astype(jnp.float32), 0.0)
    x = jnp.mean(x, axis=(1, 2))                              # [B, C]
    return x @ fc_weight.T.astype(jnp.float32) + fc_bias.astype(jnp.float32)


if __name__ == "__main__":
    key = jax.random.PRNGKey(0)

    # Test 1: small f32 NHWC feature map, single grid step (B <= 8).
    k_x, k_w, k_b = jax.random.split(key, 3)
    B, H, W, C, NCLS = 2, 8, 8, 32, 10
    x = jax.random.normal(k_x, (B, H, W, C), dtype=jnp.float32)
    fw = jax.random.normal(k_w, (NCLS, C), dtype=jnp.float32) * 0.05
    fb = jax.random.normal(k_b, (NCLS,), dtype=jnp.float32) * 0.01

    out = jax.block_until_ready(efficientnet_b2_head(x, fw, fb))
    ref = _reference(x, fw, fb)
    assert out.shape == (B, NCLS)
    assert jnp.allclose(out, ref, atol=1e-3, rtol=1e-3)

    # Test 2: bf16 features, ragged batch grid (2 steps of TB=8 over B=10)
    # and a non-multiple-of-8 HW (exercises the chunk-loop tail).
    k_x2, k_w2, k_b2 = jax.random.split(jax.random.PRNGKey(1), 3)
    B2, H2, W2, C2, NCLS2 = 10, 3, 3, 256, 7
    x2 = jax.random.normal(k_x2, (B2, H2, W2, C2), dtype=jnp.bfloat16)
    fw2 = jax.random.normal(k_w2, (NCLS2, C2), dtype=jnp.float32) * 0.05
    fb2 = jax.random.normal(k_b2, (NCLS2,), dtype=jnp.float32) * 0.01

    out2 = jax.block_until_ready(efficientnet_b2_head(x2, fw2, fb2))
    ref2 = _reference(x2, fw2, fb2)
    assert out2.shape == (B2, NCLS2)
    assert jnp.allclose(out2, ref2, atol=2e-2, rtol=2e-2)

    print("KERNEL_OK")
</pallas_src>

<mosaic_0001>
module attributes {stable_mosaic.version = 11 : i64} {
  func.func @kernel(%arg0: i32, %arg1: memref<2x64x32xf32, #tpu.memory_space<vmem>>, %arg2: memref<32x128xf32, #tpu.memory_space<vmem>>, %arg3: memref<1x128xf32, #tpu.memory_space<vmem>>, %arg4: memref<2x128xf32, #tpu.memory_space<vmem>>) attributes {dimension_semantics = [#tpu.dimension_semantics<parallel>], iteration_bounds = array<i64: 1>, scalar_prefetch = 0 : i64, scratch_operands = 0 : i64, tpu.core_type = #tpu.core_type<tc>, window_params = [{transform_indices = @transform_0, window_bounds = array<i64: 2, 64, 32>}, {pipeline_mode = #tpu.pipeline_mode<synchronous>, transform_indices = @transform_1, window_bounds = array<i64: 32, 128>}, {pipeline_mode = #tpu.pipeline_mode<synchronous>, transform_indices = @transform_2, window_bounds = array<i64: 1, 128>}, {transform_indices = @transform_3, window_bounds = array<i64: 2, 128>}]} {
    %cst = arith.constant 0.000000e+00 : f32
    %0 = vector.broadcast %cst : f32 to vector<2x32xf32>
    %c0_i32 = arith.constant 0 : i32
    %c8_i32 = arith.constant 8 : i32
    %1 = arith.muli %c0_i32, %c8_i32 : i32
    %2 = tpu.assume_multiple %1, 8 : i32
    %c0 = arith.constant 0 : index
    %3 = arith.index_cast %2 : i32 to index
    %c0_0 = arith.constant 0 : index
    %4 = vector.load %arg1[%c0, %3, %c0_0] : memref<2x64x32xf32, #tpu.memory_space<vmem>>, vector<2x8x32xf32>
    %cst_1 = arith.constant 0.000000e+00 : f32
    %5 = vector.broadcast %cst_1 : f32 to vector<2x8x32xf32>
    %6 = arith.maximumf %4, %5 : vector<2x8x32xf32>
    %cst_2 = arith.constant dense<0.000000e+00> : vector<2x32xf32>
    %7 = vector.multi_reduction <add>, %6, %cst_2 [1] : vector<2x8x32xf32> to vector<2x32xf32>
    %8 = arith.addf %0, %7 : vector<2x32xf32>
    %c1_i32 = arith.constant 1 : i32
    %c8_i32_3 = arith.constant 8 : i32
    %9 = arith.muli %c1_i32, %c8_i32_3 : i32
    %10 = tpu.assume_multiple %9, 8 : i32
    %c0_4 = arith.constant 0 : index
    %11 = arith.index_cast %10 : i32 to index
    %c0_5 = arith.constant 0 : index
    %12 = vector.load %arg1[%c0_4, %11, %c0_5] : memref<2x64x32xf32, #tpu.memory_space<vmem>>, vector<2x8x32xf32>
    %cst_6 = arith.constant 0.000000e+00 : f32
    %13 = vector.broadcast %cst_6 : f32 to vector<2x8x32xf32>
    %14 = arith.maximumf %12, %13 : vector<2x8x32xf32>
    %cst_7 = arith.constant dense<0.000000e+00> : vector<2x32xf32>
    %15 = vector.multi_reduction <add>, %14, %cst_7 [1] : vector<2x8x32xf32> to vector<2x32xf32>
    %16 = arith.addf %8, %15 : vector<2x32xf32>
    %c2_i32 = arith.constant 2 : i32
    %c8_i32_8 = arith.constant 8 : i32
    %17 = arith.muli %c2_i32, %c8_i32_8 : i32
    %18 = tpu.assume_multiple %17, 8 : i32
    %c0_9 = arith.constant 0 : index
    %19 = arith.index_cast %18 : i32 to index
    %c0_10 = arith.constant 0 : index
    %20 = vector.load %arg1[%c0_9, %19, %c0_10] : memref<2x64x32xf32, #tpu.memory_space<vmem>>, vector<2x8x32xf32>
    %cst_11 = arith.constant 0.000000e+00 : f32
    %21 = vector.broadcast %cst_11 : f32 to vector<2x8x32xf32>
    %22 = arith.maximumf %20, %21 : vector<2x8x32xf32>
    %cst_12 = arith.constant dense<0.000000e+00> : vector<2x32xf32>
    %23 = vector.multi_reduction <add>, %22, %cst_12 [1] : vector<2x8x32xf32> to vector<2x32xf32>
    %24 = arith.addf %16, %23 : vector<2x32xf32>
    %c3_i32 = arith.constant 3 : i32
    %c8_i32_13 = arith.constant 8 : i32
    %25 = arith.muli %c3_i32, %c8_i32_13 : i32
    %26 = tpu.assume_multiple %25, 8 : i32
    %c0_14 = arith.constant 0 : index
    %27 = arith.index_cast %26 : i32 to index
    %c0_15 = arith.constant 0 : index
    %28 = vector.load %arg1[%c0_14, %27, %c0_15] : memref<2x64x32xf32, #tpu.memory_space<vmem>>, vector<2x8x32xf32>
    %cst_16 = arith.constant 0.000000e+00 : f32
    %29 = vector.broadcast %cst_16 : f32 to vector<2x8x32xf32>
    %30 = arith.maximumf %28, %29 : vector<2x8x32xf32>
    %cst_17 = arith.constant dense<0.000000e+00> : vector<2x32xf32>
    %31 = vector.multi_reduction <add>, %30, %cst_17 [1] : vector<2x8x32xf32> to vector<2x32xf32>
    %32 = arith.addf %24, %31 : vector<2x32xf32>
    %c4_i32 = arith.constant 4 : i32
    %c8_i32_18 = arith.constant 8 : i32
    %33 = arith.muli %c4_i32, %c8_i32_18 : i32
    %34 = tpu.assume_multiple %33, 8 : i32
    %c0_19 = arith.constant 0 : index
    %35 = arith.index_cast %34 : i32 to index
    %c0_20 = arith.constant 0 : index
    %36 = vector.load %arg1[%c0_19, %35, %c0_20] : memref<2x64x32xf32, #tpu.memory_space<vmem>>, vector<2x8x32xf32>
    %cst_21 = arith.constant 0.000000e+00 : f32
    %37 = vector.broadcast %cst_21 : f32 to vector<2x8x32xf32>
    %38 = arith.maximumf %36, %37 : vector<2x8x32xf32>
    %cst_22 = arith.constant dense<0.000000e+00> : vector<2x32xf32>
    %39 = vector.multi_reduction <add>, %38, %cst_22 [1] : vector<2x8x32xf32> to vector<2x32xf32>
    %40 = arith.addf %32, %39 : vector<2x32xf32>
    %c5_i32 = arith.constant 5 : i32
    %c8_i32_23 = arith.constant 8 : i32
    %41 = arith.muli %c5_i32, %c8_i32_23 : i32
    %42 = tpu.assume_multiple %41, 8 : i32
    %c0_24 = arith.constant 0 : index
    %43 = arith.index_cast %42 : i32 to index
    %c0_25 = arith.constant 0 : index
    %44 = vector.load %arg1[%c0_24, %43, %c0_25] : memref<2x64x32xf32, #tpu.memory_space<vmem>>, vector<2x8x32xf32>
    %cst_26 = arith.constant 0.000000e+00 : f32
    %45 = vector.broadcast %cst_26 : f32 to vector<2x8x32xf32>
    %46 = arith.maximumf %44, %45 : vector<2x8x32xf32>
    %cst_27 = arith.constant dense<0.000000e+00> : vector<2x32xf32>
    %47 = vector.multi_reduction <add>, %46, %cst_27 [1] : vector<2x8x32xf32> to vector<2x32xf32>
    %48 = arith.addf %40, %47 : vector<2x32xf32>
    %c6_i32 = arith.constant 6 : i32
    %c8_i32_28 = arith.constant 8 : i32
    %49 = arith.muli %c6_i32, %c8_i32_28 : i32
    %50 = tpu.assume_multiple %49, 8 : i32
    %c0_29 = arith.constant 0 : index
    %51 = arith.index_cast %50 : i32 to index
    %c0_30 = arith.constant 0 : index
    %52 = vector.load %arg1[%c0_29, %51, %c0_30] : memref<2x64x32xf32, #tpu.memory_space<vmem>>, vector<2x8x32xf32>
    %cst_31 = arith.constant 0.000000e+00 : f32
    %53 = vector.broadcast %cst_31 : f32 to vector<2x8x32xf32>
    %54 = arith.maximumf %52, %53 : vector<2x8x32xf32>
    %cst_32 = arith.constant dense<0.000000e+00> : vector<2x32xf32>
    %55 = vector.multi_reduction <add>, %54, %cst_32 [1] : vector<2x8x32xf32> to vector<2x32xf32>
    %56 = arith.addf %48, %55 : vector<2x32xf32>
    %c7_i32 = arith.constant 7 : i32
    %c8_i32_33 = arith.constant 8 : i32
    %57 = arith.muli %c7_i32, %c8_i32_33 : i32
    %58 = tpu.assume_multiple %57, 8 : i32
    %c0_34 = arith.constant 0 : index
    %59 = arith.index_cast %58 : i32 to index
    %c0_35 = arith.constant 0 : index
    %60 = vector.load %arg1[%c0_34, %59, %c0_35] : memref<2x64x32xf32, #tpu.memory_space<vmem>>, vector<2x8x32xf32>
    %cst_36 = arith.constant 0.000000e+00 : f32
    %61 = vector.broadcast %cst_36 : f32 to vector<2x8x32xf32>
    %62 = arith.maximumf %60, %61 : vector<2x8x32xf32>
    %cst_37 = arith.constant dense<0.000000e+00> : vector<2x32xf32>
    %63 = vector.multi_reduction <add>, %62, %cst_37 [1] : vector<2x8x32xf32> to vector<2x32xf32>
    %64 = arith.addf %56, %63 : vector<2x32xf32>
    %c8_i32_38 = arith.constant 8 : i32
    %c0_39 = arith.constant 0 : index
    %c0_40 = arith.constant 0 : index
    %65 = vector.load %arg2[%c0_39, %c0_40] : memref<32x128xf32, #tpu.memory_space<vmem>>, vector<32x128xf32>
    %cst_41 = arith.constant dense<0.000000e+00> : vector<2x128xf32>
    %66 = tpu.matmul %64, %65, %cst_41 {dimension_numbers = #tpu.dot_dimension_numbers<[1], [0], [0], [1], [0, 0, 1, 1], [], []>} : vector<2x32xf32>, vector<32x128xf32>, vector<2x128xf32> -> vector<2x128xf32>
    %c0_42 = arith.constant 0 : index
    %c0_43 = arith.constant 0 : index
    %67 = vector.load %arg3[%c0_42, %c0_43] : memref<1x128xf32, #tpu.memory_space<vmem>>, vector<1x128xf32>
    %68 = vector.broadcast %67 : vector<1x128xf32> to vector<2x128xf32>
    %69 = arith.addf %66, %68 : vector<2x128xf32>
    %c0_44 = arith.constant 0 : index
    %c0_45 = arith.constant 0 : index
    %70 = vector.load %arg4[%c0_44, %c0_45] : memref<2x128xf32, #tpu.memory_space<vmem>>, vector<2x128xf32>
    tpu.vector_store %arg4[%c0_44, %c0_45], %69 {strides = array<i32>} : memref<2x128xf32, #tpu.memory_space<vmem>>, vector<2x128xf32>,
    return
  }
  func.func @transform_0(%arg0: i32) -> (i32, i32, i32) {
    %c0_i32 = arith.constant 0 : i32
    %c0_i32_0 = arith.constant 0 : i32
    %c0_i32_1 = arith.constant 0 : i32
    return %arg0, %c0_i32, %c0_i32_0 : i32, i32, i32
  }
  func.func @transform_1(%arg0: i32) -> (i32, i32) {
    %c0_i32 = arith.constant 0 : i32
    %c0_i32_0 = arith.constant 0 : i32
    %c0_i32_1 = arith.constant 0 : i32
    return %c0_i32, %c0_i32_0 : i32, i32
  }
  func.func @transform_2(%arg0: i32) -> (i32, i32) {
    %c0_i32 = arith.constant 0 : i32
    %c0_i32_0 = arith.constant 0 : i32
    %c0_i32_1 = arith.constant 0 : i32
    return %c0_i32, %c0_i32_0 : i32, i32
  }
  func.func @transform_3(%arg0: i32) -> (i32, i32) {
    %c0_i32 = arith.constant 0 : i32
    %c0_i32_0 = arith.constant 0 : i32
    return %arg0, %c0_i32 : i32, i32
  }
}

</mosaic_0001>

<llo_original>
// kernel: tpu_custom_call.1
$region0: #{tpu_custom_call.1}
  #allocation0 [shape = 'u32[]', space=smem, size = 0x4, offset = 0x4, fixed_abs, tag = 'smem constant byte address 0x4 - core index']
  #allocation1 [shape = 'u32[72,128]{1,0:T(1,128)}', space=vmem, size = 0x9000, scoped, tag = 'internal scratch']
  %s0 = inlined_call_operand.vmem [shape: f32[2,64,32], index: 0, kind: input, shape index: {}]
  %s1 = inlined_call_operand.vmem [shape: f32[32,128], index: 1, kind: input, shape index: {}]
  %s2 = inlined_call_operand.vmem [shape: f32[1,128], index: 2, kind: input, shape index: {}]
  %s3 = inlined_call_operand.hbm [shape: f32[2,128], index: 3, kind: output, shape index: {}]
  %s4 = sld [smem:[#allocation0]]
  $region22: #{tpu_custom_call.1} parent=0
    _
  %s6 = ssub.s32 1, %s4
  %s7 = scalar_select 0, %s6, %s4
  $region1: #{tpu_custom_call.1} parent=0
    #allocation2 [shape = 'u8[1024]{0}', space=vmem, size = 0x400, scoped, tag = 'output window, operand 0, single buffered']
    #allocation3 [shape = 's32[1]{0}', space=sflag, size = 0x4, scoped, tag = 'scoped memory for tpu_custom_call.1']
    %8 = vsyncpa [#allocation3], 0
    // Predicated region
    $region2: #{tpu_custom_call.1} parent=1 // pred_check
      _
    $region3: #{tpu_custom_call.1} parent=1 // pred_check_branch
      %10 = sbr.rel (0) target = $region5
    $region4: #{tpu_custom_call.1} parent=1 // pred_region
      _
    $region5: #{tpu_custom_call.1} parent=1 // pred_fallthru
      _
    // Predicated region
    $region6: #{tpu_custom_call.1} parent=1 // pred_check
      _
    $region7: #{tpu_custom_call.1} parent=1 // pred_check_branch
      %12 = sbr.rel (0) target = $region9
    $region8: #{tpu_custom_call.1} parent=1 // pred_region
      _
    $region9: #{tpu_custom_call.1} parent=1 // pred_fallthru
      _
    // Predicated region
    $region10: #{tpu_custom_call.1} parent=1 // pred_check
      _
    $region11: #{tpu_custom_call.1} parent=1 // pred_check_branch
      %14 = sbr.rel (0) target = $region13
    $region12: #{tpu_custom_call.1} parent=1 // pred_region
      _
    $region13: #{tpu_custom_call.1} parent=1 // pred_fallthru
      _
    %v15 = vld [vmem:[%s0] sm:$0xff]
    %v16 = vld [vmem:[%s0 + $0x40] sm:$0xff]
    %v17 = vmax.f32 %v15, 0.0
    %v18 = vmax.f32 %v16, 0.0
    %vm19 = vcmask 261120
    %v20 = vsel %vm19, %v17, 0.0
    %v21 = vrot.slane %v20, 4
    %v22 = vadd.f32 %v20, %v21
    %v23 = vrot.slane %v22, 2
    %v24 = vadd.f32 %v22, %v23
    %v25 = vrot.slane %v24, 1
    %v26 = vadd.f32 %v24, %v25
    %v27 = vsel %vm19, %v18, 0.0
    %v28 = vrot.slane %v27, 4
    %v29 = vadd.f32 %v27, %v28
    %v30 = vrot.slane %v29, 2
    %v31 = vadd.f32 %v29, %v30
    %v32 = vrot.slane %v31, 1
    %v33 = vadd.f32 %v31, %v32
    %v34 = vadd.f32 %v26, 0.0
    %v35 = vadd.f32 %v33, 0.0
    %s36 = scalar_lea.vmem %s0, 8
    %v37 = vld [vmem:[%s36] sm:$0xff]
    %v38 = vld [vmem:[%s36 + $0x40] sm:$0xff]
    %v39 = vmax.f32 %v37, 0.0
    %v40 = vmax.f32 %v38, 0.0
    %v41 = vsel %vm19, %v39, 0.0
    %v42 = vrot.slane %v41, 4
    %v43 = vadd.f32 %v41, %v42
    %v44 = vrot.slane %v43, 2
    %v45 = vadd.f32 %v43, %v44
    %v46 = vrot.slane %v45, 1
    %v47 = vadd.f32 %v45, %v46
    %v48 = vsel %vm19, %v40, 0.0
    %v49 = vrot.slane %v48, 4
    %v50 = vadd.f32 %v48, %v49
    %v51 = vrot.slane %v50, 2
    %v52 = vadd.f32 %v50, %v51
    %v53 = vrot.slane %v52, 1
    %v54 = vadd.f32 %v52, %v53
    %v55 = vadd.f32 %v34, %v47
    %v56 = vadd.f32 %v35, %v54
    %s57 = scalar_lea.vmem %s0, 16
    %v58 = vld [vmem:[%s57] sm:$0xff]
    %v59 = vld [vmem:[%s57 + $0x40] sm:$0xff]
    %v60 = vmax.f32 %v58, 0.0
    %v61 = vmax.f32 %v59, 0.0
    %v62 = vsel %vm19, %v60, 0.0
    %v63 = vrot.slane %v62, 4
    %v64 = vadd.f32 %v62, %v63
    %v65 = vrot.slane %v64, 2
    %v66 = vadd.f32 %v64, %v65
    %v67 = vrot.slane %v66, 1
    %v68 = vadd.f32 %v66, %v67
    %v69 = vsel %vm19, %v61, 0.0
    %v70 = vrot.slane %v69, 4
    %v71 = vadd.f32 %v69, %v70
    %v72 = vrot.slane %v71, 2
    %v73 = vadd.f32 %v71, %v72
    %v74 = vrot.slane %v73, 1
    %v75 = vadd.f32 %v73, %v74
    %v76 = vadd.f32 %v55, %v68
    %v77 = vadd.f32 %v56, %v75
    %s78 = scalar_lea.vmem %s0, 24
    %v79 = vld [vmem:[%s78] sm:$0xff]
    %v80 = vld [vmem:[%s78 + $0x40] sm:$0xff]
    %v81 = vmax.f32 %v79, 0.0
    %v82 = vmax.f32 %v80, 0.0
    %v83 = vsel %vm19, %v81, 0.0
    %v84 = vrot.slane %v83, 4
    %v85 = vadd.f32 %v83, %v84
    %v86 = vrot.slane %v85, 2
    %v87 = vadd.f32 %v85, %v86
    %v88 = vrot.slane %v87, 1
    %v89 = vadd.f32 %v87, %v88
    %v90 = vsel %vm19, %v82, 0.0
    %v91 = vrot.slane %v90, 4
    %v92 = vadd.f32 %v90, %v91
    %v93 = vrot.slane %v92, 2
    %v94 = vadd.f32 %v92, %v93
    %v95 = vrot.slane %v94, 1
    %v96 = vadd.f32 %v94, %v95
    %v97 = vadd.f32 %v76, %v89
    %v98 = vadd.f32 %v77, %v96
    %s99 = scalar_lea.vmem %s0, 32
    %v100 = vld [vmem:[%s99] sm:$0xff]
    %v101 = vld [vmem:[%s99 + $0x40] sm:$0xff]
    %v102 = vmax.f32 %v100, 0.0
    %v103 = vmax.f32 %v101, 0.0
    %v104 = vsel %vm19, %v102, 0.0
    %v105 = vrot.slane %v104, 4
    %v106 = vadd.f32 %v104, %v105
    %v107 = vrot.slane %v106, 2
    %v108 = vadd.f32 %v106, %v107
    %v109 = vrot.slane %v108, 1
    %v110 = vadd.f32 %v108, %v109
    %v111 = vsel %vm19, %v103, 0.0
    %v112 = vrot.slane %v111, 4
    %v113 = vadd.f32 %v111, %v112
    %v114 = vrot.slane %v113, 2
    %v115 = vadd.f32 %v113, %v114
    %v116 = vrot.slane %v115, 1
    %v117 = vadd.f32 %v115, %v116
    %v118 = vadd.f32 %v97, %v110
    %v119 = vadd.f32 %v98, %v117
    %s120 = scalar_lea.vmem %s0, 40
    %v121 = vld [vmem:[%s120] sm:$0xff]
    %v122 = vld [vmem:[%s120 + $0x40] sm:$0xff]
    %v123 = vmax.f32 %v121, 0.0
    %v124 = vmax.f32 %v122, 0.0
    %v125 = vsel %vm19, %v123, 0.0
    %v126 = vrot.slane %v125, 4
    %v127 = vadd.f32 %v125, %v126
    %v128 = vrot.slane %v127, 2
    %v129 = vadd.f32 %v127, %v128
    %v130 = vrot.slane %v129, 1
    %v131 = vadd.f32 %v129, %v130
    %v132 = vsel %vm19, %v124, 0.0
    %v133 = vrot.slane %v132, 4
    %v134 = vadd.f32 %v132, %v133
    %v135 = vrot.slane %v134, 2
    %v136 = vadd.f32 %v134, %v135
    %v137 = vrot.slane %v136, 1
    %v138 = vadd.f32 %v136, %v137
    %v139 = vadd.f32 %v118, %v131
    %v140 = vadd.f32 %v119, %v138
    %s141 = scalar_lea.vmem %s0, 48
    %v142 = vld [vmem:[%s141] sm:$0xff]
    %v143 = vld [vmem:[%s141 + $0x40] sm:$0xff]
    %v144 = vmax.f32 %v142, 0.0
    %v145 = vmax.f32 %v143, 0.0
    %v146 = vsel %vm19, %v144, 0.0
    %v147 = vrot.slane %v146, 4
    %v148 = vadd.f32 %v146, %v147
    %v149 = vrot.slane %v148, 2
    %v150 = vadd.f32 %v148, %v149
    %v151 = vrot.slane %v150, 1
    %v152 = vadd.f32 %v150, %v151
    %v153 = vsel %vm19, %v145, 0.0
    %v154 = vrot.slane %v153, 4
    %v155 = vadd.f32 %v153, %v154
    %v156 = vrot.slane %v155, 2
    %v157 = vadd.f32 %v155, %v156
    %v158 = vrot.slane %v157, 1
    %v159 = vadd.f32 %v157, %v158
    %v160 = vadd.f32 %v139, %v152
    %v161 = vadd.f32 %v140, %v159
    %s162 = scalar_lea.vmem %s0, 56
    %v163 = vld [vmem:[%s162] sm:$0xff]
    %v164 = vld [vmem:[%s162 + $0x40] sm:$0xff]
    %v165 = vmax.f32 %v163, 0.0
    %v166 = vmax.f32 %v164, 0.0
    %v167 = vsel %vm19, %v165, 0.0
    %v168 = vrot.slane %v167, 4
    %v169 = vadd.f32 %v167, %v168
    %v170 = vrot.slane %v169, 2
    %v171 = vadd.f32 %v169, %v170
    %v172 = vrot.slane %v171, 1
    %v173 = vadd.f32 %v171, %v172
    %v174 = vsel %vm19, %v166, 0.0
    %v175 = vrot.slane %v174, 4
    %v176 = vadd.f32 %v174, %v175
    %v177 = vrot.slane %v176, 2
    %v178 = vadd.f32 %v176, %v177
    %v179 = vrot.slane %v178, 1
    %v180 = vadd.f32 %v178, %v179
    %v181 = vadd.f32 %v160, %v173
    %v182 = vadd.f32 %v161, %v180
    %v183 = vld [vmem:[%s1] sm:$0xff]
    %v184 = vld [vmem:[%s1 + $0x8] sm:$0xff]
    %v185 = vld [vmem:[%s1 + $0x10] sm:$0xff]
    %v186 = vld [vmem:[%s1 + $0x18] sm:$0xff]
    %v187 = vld [vmem:[%s2] sm:$0x1]
    %v189 = vperm.slane %v187, 0
    %vm193 = vcmask 1041409
    %v194 = vsel %vm193, %v182, %v181
    %v195 = vsel %vm19, %v194, 0
    %197 = vmatpush.msra.mxu0 0.0
    %198 = vmatpush.msra.mxu0 0.0
    %199 = vmatpush.msra.mxu0 0.0
    %200 = vmatpush.msra.mxu0 0.0
    %201 = vmatpush.msra.mxu0 0.0
    %202 = vmatpush.msra.mxu0 0.0
    %203 = vmatpush.msra.mxu0 0.0
    %204 = vmatpush.msra.mxu0 0.0
    %205 = vmatpush.msra.mxu0 0.0
    %206 = vmatpush.msra.mxu0 0.0
    %207 = vmatpush.msra.mxu0 0.0
    %208 = vmatpush.msra.mxu0 0.0
    %209 = vmatpush.msra.mxu0 %v186
    %210 = vmatpush.msra.mxu0 %v185
    %211 = vmatpush.msra.mxu0 %v184
    %212 = vmatpush.msra.mxu0 %v183
    %213 = vmatmul.f32.gmra.mxu0 %v195
    %v214 = vpop.f32.mrf.mxu0
    %v215 = vadd.f32 %v189, %v214
    %216 = vdwg.mxu0
    %217 = vst [vmem:[#allocation2] sm:$0x3] %v215
    // Predicated region
    $region14: #{tpu_custom_call.1} parent=1 // pred_check
      _
    $region15: #{tpu_custom_call.1} parent=1 // pred_check_branch
      %219 = sbr.rel (0) target = $region17
    $region16: #{tpu_custom_call.1} parent=1 // pred_region
      %221 = vsyncadd [#allocation3], 0
      %s223 = sshll.u32 [#allocation2], 4
      %s224 = int_to_ptr.vmem [resolvable:$true] %s223
      %s225 = sshll.u32 %s3, 4
      %s226 = int_to_ptr.hbm [resolvable:$true] %s225
      %228 = dma.vmem_to_hbm [thread:$0]  %s224, 32, %s226, [#allocation3]
    $region17: #{tpu_custom_call.1} parent=1 // pred_fallthru
      _
    // Predicated region
    $region18: #{tpu_custom_call.1} parent=1 // pred_check
      _
    $region19: #{tpu_custom_call.1} parent=1 // pred_check_branch
      %230 = sbr.rel (0) target = $region21
    $region20: #{tpu_custom_call.1} parent=1 // pred_region
      %232 = dma.done [#allocation3], 32
    $region21: #{tpu_custom_call.1} parent=1 // pred_fallthru
      _
    %233 = vsyncpa [#allocation3], 1

</llo_original>
